<compile_context>
chip_gen: v5e
topology: v5e:2x2
jax: 0.10.0
libtpu: 0.0.40
codegen_flags: <defaults>
</compile_context>

<pallas_src>
import functools
import math

import jax
import jax.numpy as jnp
from jax.experimental import pallas as pl
from jax.experimental.pallas import tpu as pltpu


def _fused_gcn_kernel(a_hbm_ref, xt_ref, wt_ref, bt_ref, ot_ref, at_vmem,
                      *, num_layers):
    """Transposed-layout fused GCN stack.

    a_hbm_ref : (N, N)   bf16  A^T in HBM (memory_space=pl.ANY)
    xt_ref    : (F, N)   f32   x_0^T
    wt_ref    : (L, F, F) bf16 stacked W_l^T
    bt_ref    : (L, F, 1) f32  stacked b_l^T
    ot_ref    : (L, F, N) f32  per-layer outputs (transposed)
    at_vmem   : (N, N)   bf16  scratch — single-buffered VMEM copy of A^T
    """
    # A^T HBM -> VMEM exactly once; resident across every layer (single copy,
    # no per-layer HBM re-stream, no 2x double-buffer of the dominant array).
    pltpu.sync_copy(a_hbm_ref, at_vmem)

    xt = xt_ref[...]                                          # (F, N) f32 running x^T
    for l in range(num_layers):   # static unroll (L small)
        # TODO(synk): switch to lax.fori_loop with dynamic wt_ref[l]/bt_ref[l]
        # indexing if num_layers ever grows past ~8 (bounds live ranges).
        # (x_l @ W_l)^T = W_l^T @ x_l^T         (MXU, bf16 in / f32 accumulate)
        xw_t = jnp.dot(wt_ref[l], xt.astype(jnp.bfloat16),
                       preferred_element_type=jnp.float32)    # (F, N)
        # (A @ (x_l W_l))^T = (x_l W_l)^T @ A^T  -> dominant matmul, lane width N
        ax_t = jnp.dot(xw_t.astype(jnp.bfloat16), at_vmem[...],
                       preferred_element_type=jnp.float32)    # (F, N)
        # f32 epilogue on the VPU: bias + residual + ReLU (full-lane vregs)
        xt = jnp.maximum(ax_t + bt_ref[l] + xt, 0.0)
        # full-width (F, N) store of this layer's slab of the output
        ot_ref[l] = xt.astype(ot_ref.dtype)


def _xla_gcn_stack(a, x, w_stack, b_stack):
    """Plain-XLA f32 path: reference + fallback when dense A cannot fit VMEM."""
    outs = []
    for l in range(int(w_stack.shape[0])):
        x = jax.nn.relu(a @ (x @ w_stack[l]) + b_stack[l] + x)
        outs.append(x)
    return jnp.concatenate(outs, axis=-1)


def _vmem_capacity_bytes():
    try:
        return int(pltpu.get_tpu_info().vmem_capacity_bytes)
    except Exception:
        return 64 << 20   # conservative default (v7x per-core VMEM)


def fused_headline_para_gcn(a, x, w_stack, b_stack):
    """Run all GCN layers in one fused Pallas kernel. Returns (N, L*F) f32."""
    n, f = x.shape
    num_layers = int(w_stack.shape[0])
    out_f = num_layers * f

    # ---- transposed-layout operands (built once in XLA; all cheap vs. A) ----
    # Explicit A^T (do NOT rely on gcn_norm symmetry -> safe for directed graphs).
    a_t = jnp.swapaxes(a, 0, 1).astype(jnp.bfloat16)                # (N, N)
    x_t = jnp.swapaxes(x.astype(jnp.float32), 0, 1)                 # (F, N)
    wt_stack = jnp.swapaxes(w_stack, 1, 2).astype(jnp.bfloat16)     # (L, F, F) = W^T
    bt_stack = jnp.swapaxes(b_stack.astype(jnp.float32), 1, 2)      # (L, F, 1)

    # ---- generation-aware VMEM budget ----
    a_bytes = n * n * 2                        # single-buffered scratch copy of A^T
    xt_bytes = f * n * 4
    wt_bytes = num_layers * f * f * 2
    bt_bytes = num_layers * f * 128 * 4        # lane-padded (F, 1) tiles
    out_bytes = num_layers * f * n * 4
    # small inputs / output keep default double-buffering; 4 MiB headroom for
    # kernel-internal temporaries and layout padding.
    needed = a_bytes + 2 * (xt_bytes + wt_bytes + bt_bytes + out_bytes) + (4 << 20)
    budget = int(0.85 * _vmem_capacity_bytes())
    if needed > budget:
        # TODO(synk): tiled / block-diagonal (per star-graph group) Pallas path with a
        # 'parallel' group grid axis (v7x 2-TC) once dense A no longer fits VMEM.
        return _xla_gcn_stack(a.astype(jnp.float32), x.astype(jnp.float32),
                              w_stack.astype(jnp.float32), b_stack.astype(jnp.float32))
    vmem_limit = int(min(max(needed, 32 << 20), budget))

    flops = num_layers * (2 * n * f * f + 2 * n * n * f)
    bytes_accessed = a_bytes + xt_bytes + wt_bytes + num_layers * f * 4 + out_bytes
    cost = pl.CostEstimate(flops=flops, transcendentals=0,
                           bytes_accessed=bytes_accessed)

    kernel = functools.partial(_fused_gcn_kernel, num_layers=num_layers)
    out_t = pl.pallas_call(
        kernel,
        out_shape=jax.ShapeDtypeStruct((num_layers, f, n), jnp.float32),
        grid=(1,),
        in_specs=[
            pl.BlockSpec(memory_space=pl.ANY),                         # A^T (bf16), HBM
            pl.BlockSpec((f, n), lambda i: (0, 0)),                    # x0^T (f32)
            pl.BlockSpec((num_layers, f, f), lambda i: (0, 0, 0)),     # W^T stack (bf16)
            pl.BlockSpec((num_layers, f, 1), lambda i: (0, 0, 0)),     # b^T stack (f32)
        ],
        out_specs=pl.BlockSpec((num_layers, f, n), lambda i: (0, 0, 0)),  # (L, F, N)
        scratch_shapes=[pltpu.VMEM((n, n), jnp.bfloat16)],             # A^T, single copy
        compiler_params=pltpu.CompilerParams(
            dimension_semantics=("arbitrary",),
            vmem_limit_bytes=vmem_limit),
        cost_estimate=cost,
    )(a_t, x_t, wt_stack, bt_stack)

    # back to reference layout: out[:, l*F:(l+1)*F] = x_l
    return jnp.transpose(out_t, (2, 0, 1)).reshape(n, out_f)


def normalized_adjacency(edge_index, edge_weight, num_nodes):
    """PyG GCNConv default normalization: add self loops, D^-1/2 (A+I) D^-1/2,
    returned as a dense (N_dst, N_src) matrix (float32)."""
    row, col = edge_index[0], edge_index[1]
    if edge_weight is None:
        edge_weight = jnp.ones(row.shape[0], dtype=jnp.float32)
    loop = jnp.arange(num_nodes, dtype=edge_index.dtype)
    row = jnp.concatenate([row, loop])
    col = jnp.concatenate([col, loop])
    edge_weight = jnp.concatenate(
        [edge_weight.astype(jnp.float32), jnp.ones(num_nodes, jnp.float32)])
    deg = jnp.zeros(num_nodes, jnp.float32).at[col].add(edge_weight)
    deg_inv_sqrt = jnp.where(deg > 0, jax.lax.rsqrt(deg), 0.0)
    norm = deg_inv_sqrt[row] * edge_weight * deg_inv_sqrt[col]
    a = jnp.zeros((num_nodes, num_nodes), jnp.float32).at[col, row].add(norm)
    return a


def init_params(key, num_layers, in_features, out_features):
    """GCNConv init: glorot-uniform weight, zero bias. Returns stacked (L,F,F), (L,1,F)."""
    # residual `x + gconv(x)` in the reference module requires in == out features
    assert in_features == out_features, "residual requires in_features == out_features"
    ws, bs = [], []
    for _ in range(num_layers):
        key, sub = jax.random.split(key)
        limit = math.sqrt(6.0 / (in_features + out_features))
        ws.append(jax.random.uniform(sub, (in_features, out_features), jnp.float32,
                                     minval=-limit, maxval=limit))
        bs.append(jnp.zeros((1, out_features), jnp.float32))
    return jnp.stack(ws), jnp.stack(bs)


@jax.jit
def headline_para_gnn(h_headline, h_para, edge_index, w_stack, b_stack,
                      edge_weight=None):
    b_sz, p_sz, f = h_para.shape
    x = jnp.concatenate([h_headline[:, None, :], h_para], axis=1)   # (B, 1+P, F)
    n = b_sz * (1 + p_sz)
    x = x.reshape(n, f)
    a = normalized_adjacency(edge_index, edge_weight, n)
    out = fused_headline_para_gcn(a, x, w_stack, b_stack)           # (N, L*F)
    out = out.reshape(b_sz, 1 + p_sz, -1)
    h_headline_out = out[:, :1, :]                                  # split [1, P] on dim=1
    h_para_out = out[:, 1:, :]
    return h_headline_out, h_para_out


if __name__ == "__main__":
    # small deterministic example
    NUM_LAYERS = 4                     # concatenated output = 4*32 = 128 features
    IN_FEATURES = OUT_FEATURES = 32    # residual x + gconv(x) requires equal dims
    B, P = 2, 7                        # N = B * (1 + P) = 16 nodes

    key = jax.random.PRNGKey(0)
    k_head, k_para, k_params = jax.random.split(key, 3)
    h_headline = jax.random.normal(k_head, (B, IN_FEATURES), jnp.float32)
    h_para = jax.random.normal(k_para, (B, P, IN_FEATURES), jnp.float32)

    # graph: within each (headline, paragraphs) group, connect headline <-> each para
    src, dst = [], []
    for g in range(B):
        base = g * (1 + P)
        for j in range(1, 1 + P):
            src += [base, base + j]
            dst += [base + j, base]
    edge_index = jnp.array([src, dst], dtype=jnp.int32)   # (2, 2*B*P) = (2, 28)
    edge_weight = None

    w_stack, b_stack = init_params(k_params, NUM_LAYERS, IN_FEATURES, OUT_FEATURES)

    h_head_out, h_para_out = headline_para_gnn(
        h_headline, h_para, edge_index, w_stack, b_stack, edge_weight)
    jax.block_until_ready((h_head_out, h_para_out))

    assert h_head_out.shape == (B, 1, NUM_LAYERS * OUT_FEATURES)
    assert h_para_out.shape == (B, P, NUM_LAYERS * OUT_FEATURES)
    assert bool(jnp.all(jnp.isfinite(h_head_out)))
    assert bool(jnp.all(jnp.isfinite(h_para_out)))

    # loose numerical check against a pure-XLA float32 reference
    # (kernel uses bf16 MXU operands with f32 accumulation)
    n_nodes = B * (1 + P)
    x0 = jnp.concatenate([h_headline[:, None, :], h_para], axis=1).reshape(
        n_nodes, IN_FEATURES)
    a_f32 = normalized_adjacency(edge_index, edge_weight, n_nodes)
    ref = _xla_gcn_stack(a_f32, x0, w_stack, b_stack)
    got = jnp.concatenate([h_head_out, h_para_out], axis=1).reshape(
        n_nodes, NUM_LAYERS * OUT_FEATURES)
    max_err = float(jnp.max(jnp.abs(got - ref)))
    scale = float(jnp.max(jnp.abs(ref)))
    assert max_err <= 0.1 * scale + 0.1, (max_err, scale)

    print("KERNEL_OK")
</pallas_src>

<mosaic_0001>
module attributes {stable_mosaic.version = 11 : i64} {
  func.func @_fused_gcn_kernel(%arg0: i32, %arg1: memref<16x16xbf16, #tpu.memory_space<any>>, %arg2: memref<32x16xf32, #tpu.memory_space<vmem>>, %arg3: memref<4x32x32xbf16, #tpu.memory_space<vmem>>, %arg4: memref<4x32x1xf32, #tpu.memory_space<vmem>>, %arg5: memref<4x32x16xf32, #tpu.memory_space<vmem>>, %arg6: memref<16x16xbf16, #tpu.memory_space<vmem>>) attributes {dimension_semantics = [#tpu.dimension_semantics<arbitrary>], iteration_bounds = array<i64: 1>, scalar_prefetch = 0 : i64, scratch_operands = 1 : i64, tpu.core_type = #tpu.core_type<tc>, window_params = [{}, {pipeline_mode = #tpu.pipeline_mode<synchronous>, transform_indices = @transform_1, window_bounds = array<i64: 32, 16>}, {pipeline_mode = #tpu.pipeline_mode<synchronous>, transform_indices = @transform_2, window_bounds = array<i64: 4, 32, 32>}, {pipeline_mode = #tpu.pipeline_mode<synchronous>, transform_indices = @transform_3, window_bounds = array<i64: 4, 32, 1>}, {pipeline_mode = #tpu.pipeline_mode<synchronous>, transform_indices = @transform_4, window_bounds = array<i64: 4, 32, 16>}]} {
    "tpu.region"() ({
      %69 = tpu.sem_alloc : memref<!tpu.dma_semaphore, #tpu.memory_space<semaphore_mem>>
      tpu.enqueue_dma source(%arg1 : memref<16x16xbf16, #tpu.memory_space<any>>) target(%arg6 : memref<16x16xbf16, #tpu.memory_space<vmem>>) target_semaphore(%69 : memref<!tpu.dma_semaphore, #tpu.memory_space<semaphore_mem>>)
      tpu.wait_dma2 semaphore(%69 : memref<!tpu.dma_semaphore, #tpu.memory_space<semaphore_mem>>) src(%arg1 : memref<16x16xbf16, #tpu.memory_space<any>>) dst(%arg6 : memref<16x16xbf16, #tpu.memory_space<vmem>>)
      tpu.yield
    }) : () -> ()
    %c0 = arith.constant 0 : index
    %c0_0 = arith.constant 0 : index
    %0 = vector.load %arg2[%c0, %c0_0] : memref<32x16xf32, #tpu.memory_space<vmem>>, vector<32x16xf32>
    %c0_1 = arith.constant 0 : index
    %c0_2 = arith.constant 0 : index
    %c0_3 = arith.constant 0 : index
    %1 = vector.load %arg3[%c0_1, %c0_2, %c0_3] : memref<4x32x32xbf16, #tpu.memory_space<vmem>>, vector<1x32x32xbf16>
    %2 = vector.shape_cast %1 : vector<1x32x32xbf16> to vector<32x32xbf16>
    %3 = arith.truncf %0 : vector<32x16xf32> to vector<32x16xbf16>
    %cst = arith.constant dense<0.000000e+00> : vector<32x16xf32>
    %4 = tpu.matmul %2, %3, %cst {dimension_numbers = #tpu.dot_dimension_numbers<[1], [0], [0], [1], [0, 0, 1, 1], [], []>} : vector<32x32xbf16>, vector<32x16xbf16>, vector<32x16xf32> -> vector<32x16xf32>
    %5 = arith.truncf %4 : vector<32x16xf32> to vector<32x16xbf16>
    %c0_4 = arith.constant 0 : index
    %c0_5 = arith.constant 0 : index
    %6 = vector.load %arg6[%c0_4, %c0_5] : memref<16x16xbf16, #tpu.memory_space<vmem>>, vector<16x16xbf16>
    %cst_6 = arith.constant dense<0.000000e+00> : vector<32x16xf32>
    %7 = tpu.matmul %5, %6, %cst_6 {dimension_numbers = #tpu.dot_dimension_numbers<[1], [0], [0], [1], [0, 0, 1, 1], [], []>} : vector<32x16xbf16>, vector<16x16xbf16>, vector<32x16xf32> -> vector<32x16xf32>
    %c0_7 = arith.constant 0 : index
    %c0_8 = arith.constant 0 : index
    %c0_9 = arith.constant 0 : index
    %8 = vector.load %arg4[%c0_7, %c0_8, %c0_9] : memref<4x32x1xf32, #tpu.memory_space<vmem>>, vector<1x32x1xf32>
    %9 = vector.shape_cast %8 : vector<1x32x1xf32> to vector<32x1xf32>
    %10 = vector.broadcast %9 : vector<32x1xf32> to vector<32x16xf32>
    %11 = arith.addf %7, %10 : vector<32x16xf32>
    %12 = arith.addf %11, %0 : vector<32x16xf32>
    %cst_10 = arith.constant 0.000000e+00 : f32
    %13 = vector.broadcast %cst_10 : f32 to vector<32x16xf32>
    %14 = arith.maximumf %12, %13 : vector<32x16xf32>
    %c0_11 = arith.constant 0 : index
    %c0_12 = arith.constant 0 : index
    %c0_13 = arith.constant 0 : index
    %15 = vector.load %arg5[%c0_11, %c0_12, %c0_13] : memref<4x32x16xf32, #tpu.memory_space<vmem>>, vector<1x32x16xf32>
    %16 = vector.shape_cast %15 : vector<1x32x16xf32> to vector<32x16xf32>
    %17 = vector.shape_cast %14 : vector<32x16xf32> to vector<1x32x16xf32>
    tpu.vector_store %arg5[%c0_11, %c0_12, %c0_13], %17 {strides = array<i32>} : memref<4x32x16xf32, #tpu.memory_space<vmem>>, vector<1x32x16xf32>,
    %c1 = arith.constant 1 : index
    %c0_14 = arith.constant 0 : index
    %c0_15 = arith.constant 0 : index
    %18 = vector.load %arg3[%c1, %c0_14, %c0_15] : memref<4x32x32xbf16, #tpu.memory_space<vmem>>, vector<1x32x32xbf16>
    %19 = vector.shape_cast %18 : vector<1x32x32xbf16> to vector<32x32xbf16>
    %20 = arith.truncf %14 : vector<32x16xf32> to vector<32x16xbf16>
    %cst_16 = arith.constant dense<0.000000e+00> : vector<32x16xf32>
    %21 = tpu.matmul %19, %20, %cst_16 {dimension_numbers = #tpu.dot_dimension_numbers<[1], [0], [0], [1], [0, 0, 1, 1], [], []>} : vector<32x32xbf16>, vector<32x16xbf16>, vector<32x16xf32> -> vector<32x16xf32>
    %22 = arith.truncf %21 : vector<32x16xf32> to vector<32x16xbf16>
    %c0_17 = arith.constant 0 : index
    %c0_18 = arith.constant 0 : index
    %23 = vector.load %arg6[%c0_17, %c0_18] : memref<16x16xbf16, #tpu.memory_space<vmem>>, vector<16x16xbf16>
    %cst_19 = arith.constant dense<0.000000e+00> : vector<32x16xf32>
    %24 = tpu.matmul %22, %23, %cst_19 {dimension_numbers = #tpu.dot_dimension_numbers<[1], [0], [0], [1], [0, 0, 1, 1], [], []>} : vector<32x16xbf16>, vector<16x16xbf16>, vector<32x16xf32> -> vector<32x16xf32>
    %c1_20 = arith.constant 1 : index
    %c0_21 = arith.constant 0 : index
    %c0_22 = arith.constant 0 : index
    %25 = vector.load %arg4[%c1_20, %c0_21, %c0_22] : memref<4x32x1xf32, #tpu.memory_space<vmem>>, vector<1x32x1xf32>
    %26 = vector.shape_cast %25 : vector<1x32x1xf32> to vector<32x1xf32>
    %27 = vector.broadcast %26 : vector<32x1xf32> to vector<32x16xf32>
    %28 = arith.addf %24, %27 : vector<32x16xf32>
    %29 = arith.addf %28, %14 : vector<32x16xf32>
    %cst_23 = arith.constant 0.000000e+00 : f32
    %30 = vector.broadcast %cst_23 : f32 to vector<32x16xf32>
    %31 = arith.maximumf %29, %30 : vector<32x16xf32>
    %c1_24 = arith.constant 1 : index
    %c0_25 = arith.constant 0 : index
    %c0_26 = arith.constant 0 : index
    %32 = vector.load %arg5[%c1_24, %c0_25, %c0_26] : memref<4x32x16xf32, #tpu.memory_space<vmem>>, vector<1x32x16xf32>
    %33 = vector.shape_cast %32 : vector<1x32x16xf32> to vector<32x16xf32>
    %34 = vector.shape_cast %31 : vector<32x16xf32> to vector<1x32x16xf32>
    tpu.vector_store %arg5[%c1_24, %c0_25, %c0_26], %34 {strides = array<i32>} : memref<4x32x16xf32, #tpu.memory_space<vmem>>, vector<1x32x16xf32>,
    %c2 = arith.constant 2 : index
    %c0_27 = arith.constant 0 : index
    %c0_28 = arith.constant 0 : index
    %35 = vector.load %arg3[%c2, %c0_27, %c0_28] : memref<4x32x32xbf16, #tpu.memory_space<vmem>>, vector<1x32x32xbf16>
    %36 = vector.shape_cast %35 : vector<1x32x32xbf16> to vector<32x32xbf16>
    %37 = arith.truncf %31 : vector<32x16xf32> to vector<32x16xbf16>
    %cst_29 = arith.constant dense<0.000000e+00> : vector<32x16xf32>
    %38 = tpu.matmul %36, %37, %cst_29 {dimension_numbers = #tpu.dot_dimension_numbers<[1], [0], [0], [1], [0, 0, 1, 1], [], []>} : vector<32x32xbf16>, vector<32x16xbf16>, vector<32x16xf32> -> vector<32x16xf32>
    %39 = arith.truncf %38 : vector<32x16xf32> to vector<32x16xbf16>
    %c0_30 = arith.constant 0 : index
    %c0_31 = arith.constant 0 : index
    %40 = vector.load %arg6[%c0_30, %c0_31] : memref<16x16xbf16, #tpu.memory_space<vmem>>, vector<16x16xbf16>
    %cst_32 = arith.constant dense<0.000000e+00> : vector<32x16xf32>
    %41 = tpu.matmul %39, %40, %cst_32 {dimension_numbers = #tpu.dot_dimension_numbers<[1], [0], [0], [1], [0, 0, 1, 1], [], []>} : vector<32x16xbf16>, vector<16x16xbf16>, vector<32x16xf32> -> vector<32x16xf32>
    %c2_33 = arith.constant 2 : index
    %c0_34 = arith.constant 0 : index
    %c0_35 = arith.constant 0 : index
    %42 = vector.load %arg4[%c2_33, %c0_34, %c0_35] : memref<4x32x1xf32, #tpu.memory_space<vmem>>, vector<1x32x1xf32>
    %43 = vector.shape_cast %42 : vector<1x32x1xf32> to vector<32x1xf32>
    %44 = vector.broadcast %43 : vector<32x1xf32> to vector<32x16xf32>
    %45 = arith.addf %41, %44 : vector<32x16xf32>
    %46 = arith.addf %45, %31 : vector<32x16xf32>
    %cst_36 = arith.constant 0.000000e+00 : f32
    %47 = vector.broadcast %cst_36 : f32 to vector<32x16xf32>
    %48 = arith.maximumf %46, %47 : vector<32x16xf32>
    %c2_37 = arith.constant 2 : index
    %c0_38 = arith.constant 0 : index
    %c0_39 = arith.constant 0 : index
    %49 = vector.load %arg5[%c2_37, %c0_38, %c0_39] : memref<4x32x16xf32, #tpu.memory_space<vmem>>, vector<1x32x16xf32>
    %50 = vector.shape_cast %49 : vector<1x32x16xf32> to vector<32x16xf32>
    %51 = vector.shape_cast %48 : vector<32x16xf32> to vector<1x32x16xf32>
    tpu.vector_store %arg5[%c2_37, %c0_38, %c0_39], %51 {strides = array<i32>} : memref<4x32x16xf32, #tpu.memory_space<vmem>>, vector<1x32x16xf32>,
    %c3 = arith.constant 3 : index
    %c0_40 = arith.constant 0 : index
    %c0_41 = arith.constant 0 : index
    %52 = vector.load %arg3[%c3, %c0_40, %c0_41] : memref<4x32x32xbf16, #tpu.memory_space<vmem>>, vector<1x32x32xbf16>
    %53 = vector.shape_cast %52 : vector<1x32x32xbf16> to vector<32x32xbf16>
    %54 = arith.truncf %48 : vector<32x16xf32> to vector<32x16xbf16>
    %cst_42 = arith.constant dense<0.000000e+00> : vector<32x16xf32>
    %55 = tpu.matmul %53, %54, %cst_42 {dimension_numbers = #tpu.dot_dimension_numbers<[1], [0], [0], [1], [0, 0, 1, 1], [], []>} : vector<32x32xbf16>, vector<32x16xbf16>, vector<32x16xf32> -> vector<32x16xf32>
    %56 = arith.truncf %55 : vector<32x16xf32> to vector<32x16xbf16>
    %c0_43 = arith.constant 0 : index
    %c0_44 = arith.constant 0 : index
    %57 = vector.load %arg6[%c0_43, %c0_44] : memref<16x16xbf16, #tpu.memory_space<vmem>>, vector<16x16xbf16>
    %cst_45 = arith.constant dense<0.000000e+00> : vector<32x16xf32>
    %58 = tpu.matmul %56, %57, %cst_45 {dimension_numbers = #tpu.dot_dimension_numbers<[1], [0], [0], [1], [0, 0, 1, 1], [], []>} : vector<32x16xbf16>, vector<16x16xbf16>, vector<32x16xf32> -> vector<32x16xf32>
    %c3_46 = arith.constant 3 : index
    %c0_47 = arith.constant 0 : index
    %c0_48 = arith.constant 0 : index
    %59 = vector.load %arg4[%c3_46, %c0_47, %c0_48] : memref<4x32x1xf32, #tpu.memory_space<vmem>>, vector<1x32x1xf32>
    %60 = vector.shape_cast %59 : vector<1x32x1xf32> to vector<32x1xf32>
    %61 = vector.broadcast %60 : vector<32x1xf32> to vector<32x16xf32>
    %62 = arith.addf %58, %61 : vector<32x16xf32>
    %63 = arith.addf %62, %48 : vector<32x16xf32>
    %cst_49 = arith.constant 0.000000e+00 : f32
    %64 = vector.broadcast %cst_49 : f32 to vector<32x16xf32>
    %65 = arith.maximumf %63, %64 : vector<32x16xf32>
    %c3_50 = arith.constant 3 : index
    %c0_51 = arith.constant 0 : index
    %c0_52 = arith.constant 0 : index
    %66 = vector.load %arg5[%c3_50, %c0_51, %c0_52] : memref<4x32x16xf32, #tpu.memory_space<vmem>>, vector<1x32x16xf32>
    %67 = vector.shape_cast %66 : vector<1x32x16xf32> to vector<32x16xf32>
    %68 = vector.shape_cast %65 : vector<32x16xf32> to vector<1x32x16xf32>
    tpu.vector_store %arg5[%c3_50, %c0_51, %c0_52], %68 {strides = array<i32>} : memref<4x32x16xf32, #tpu.memory_space<vmem>>, vector<1x32x16xf32>,
    return
  }
  func.func @transform_1(%arg0: i32) -> (i32, i32) {
    %c0_i32 = arith.constant 0 : i32
    %c0_i32_0 = arith.constant 0 : i32
    %c0_i32_1 = arith.constant 0 : i32
    return %c0_i32, %c0_i32_0 : i32, i32
  }
  func.func @transform_2(%arg0: i32) -> (i32, i32, i32) {
    %c0_i32 = arith.constant 0 : i32
    %c0_i32_0 = arith.constant 0 : i32
    %c0_i32_1 = arith.constant 0 : i32
    %c0_i32_2 = arith.constant 0 : i32
    return %c0_i32, %c0_i32_0, %c0_i32_1 : i32, i32, i32
  }
  func.func @transform_3(%arg0: i32) -> (i32, i32, i32) {
    %c0_i32 = arith.constant 0 : i32
    %c0_i32_0 = arith.constant 0 : i32
    %c0_i32_1 = arith.constant 0 : i32
    %c0_i32_2 = arith.constant 0 : i32
    return %c0_i32, %c0_i32_0, %c0_i32_1 : i32, i32, i32
  }
  func.func @transform_4(%arg0: i32) -> (i32, i32, i32) {
    %c0_i32 = arith.constant 0 : i32
    %c0_i32_0 = arith.constant 0 : i32
    %c0_i32_1 = arith.constant 0 : i32
    %c0_i32_2 = arith.constant 0 : i32
    return %c0_i32, %c0_i32_0, %c0_i32_1 : i32, i32, i32
  }
}

</mosaic_0001>

<llo_original>
// kernel: mul.1
$region0: #{mul.1}
  #allocation0 [shape = 's32[1]{0}', space=sflag, size = 0x4, scoped, tag = 'scoped memory for mul.1']
  %s0 = inlined_call_operand.vmem [shape: f32[44], index: 0, kind: input, shape index: {}]
  %s1 = inlined_call_operand.vmem [shape: f32[44], index: 1, kind: input, shape index: {}]
  %s2 = inlined_call_operand.vmem [shape: f32[44], index: 2, kind: output, shape index: {}]
  %v3 = vld [vmem:[%s0] sm:$0x1]
  %v4 = vld [vmem:[%s1] sm:$0x1]
  %5 = xla_tuple %v3, %v4
  %6 = xla_tuple %5
  %v7 = vmul.f32 %v3, %v4
  %8 = xla_tuple %v7
  %9 = vst [vmem:[%s2] sm:$0x1] %v7

// kernel: headline_para_gnn.1
$region0: #{headline_para_gnn.1}
  #allocation0 [shape = 'u32[]', space=smem, size = 0x4, offset = 0x4, fixed_abs, tag = 'smem constant byte address 0x4 - core index']
  #allocation1 [shape = 'u32[72,128]{1,0:T(1,128)}', space=vmem, size = 0x9000, scoped, tag = 'internal scratch']
  #allocation2 [shape = 'bf16[16,16]{1,0:T(8,128)(2,1)}', space=vmem, size = 0x1000, scoped, tag = 'scratch operand']
  #allocation4 [shape = 's32[]', space=sflag, size = 0x4, offset = 0, fixed_abs, tag = 'sflag constant byte address 0x0 - dummy sync flag']
  %s0 = inlined_call_operand.vmem [shape: bf16[16,16], index: 0, kind: input, shape index: {}]
  %s1 = inlined_call_operand.vmem [shape: f32[32,16], index: 1, kind: input, shape index: {}]
  %s2 = inlined_call_operand.vmem [shape: bf16[4,32,32], index: 2, kind: input, shape index: {}]
  %s3 = inlined_call_operand.vmem [shape: f32[4,32,1], index: 3, kind: input, shape index: {}]
  %s4 = inlined_call_operand.vmem [shape: f32[4,32,16], index: 4, kind: output, shape index: {}]
  %s5 = sld [smem:[#allocation0]]
  $region57: #{headline_para_gnn.1} parent=0
    _
  %s7 = ssub.s32 1, %s5
  %s8 = scalar_select 0, %s7, %s5
  // Predicated region
  $region2: #{headline_para_gnn.1} parent=0 // pred_check
    _
  $region3: #{headline_para_gnn.1} parent=0 // pred_check_branch
    %10 = sbr.rel (0) target = $region5
  $region4: #{headline_para_gnn.1} parent=0 // pred_region
    _
  $region5: #{headline_para_gnn.1} parent=0 // pred_fallthru
    _
  // Predicated region
  $region6: #{headline_para_gnn.1} parent=0 // pred_check
    _
  $region7: #{headline_para_gnn.1} parent=0 // pred_check_branch
    %12 = sbr.rel (0) target = $region9
  $region8: #{headline_para_gnn.1} parent=0 // pred_region
    _
  $region9: #{headline_para_gnn.1} parent=0 // pred_fallthru
    _
  // Predicated region
  $region10: #{headline_para_gnn.1} parent=0 // pred_check
    _
  $region11: #{headline_para_gnn.1} parent=0 // pred_check_branch
    %14 = sbr.rel (0) target = $region13
  $region12: #{headline_para_gnn.1} parent=0 // pred_region
    _
  $region13: #{headline_para_gnn.1} parent=0 // pred_fallthru
    _
  $region14: #{headline_para_gnn.1} parent=0
    #allocation3 [shape = 's32[1]{0}', space=sflag, size = 0x4, scoped, tag = 'scoped memory for headline_para_gnn.1']
    // Predicated region
    $region15: #{headline_para_gnn.1} parent=14 // pred_check
      _
    $region16: #{headline_para_gnn.1} parent=14 // pred_check_branch
      %17 = sbr.rel (0) target = $region18
    $region17: #{headline_para_gnn.1} parent=14 // pred_region
      // Predicated region
      $region30: #{headline_para_gnn.1} parent=17 // pred_check
        _
      $region31: #{headline_para_gnn.1} parent=17 // pred_check_branch
        %33 = sbr.rel (0) target = $region33
      $region32: #{headline_para_gnn.1} parent=17 // pred_region
        loop: start=0, step=1, limit=1
        $region34: #{headline_para_gnn.1} parent=32 // loop_pre_header
          _
        $region35: #{headline_para_gnn.1} parent=32 // loop_header
          %s35 = sphi 0, %s39
          %p36 = scmp.ge.s32.totalorder %s35, 1
          %s40 = sphi %s0, %s0
          %s41 = sphi [#allocation2], [#allocation2]
        $region36: #{headline_para_gnn.1} parent=32 // loop_header_branch
          %38 = sbr.rel (%p36) target = $region40
        $region37: #{headline_para_gnn.1} parent=32 // loop_body
          %v42 = vld [vmem:[%s40] sm:$0xff]
          %43 = vst [vmem:[%s41] sm:$0xff] %v42
        $region38: #{headline_para_gnn.1} parent=32 // loop_footer
          %s39 = sadd.s32 1, %s35
        $region39: #{headline_para_gnn.1} parent=32 // loop_footer_branch
          %34 = sbr.rel target = $region35
        $region40: #{headline_para_gnn.1} parent=32 // loop_exit
          _
      $region33: #{headline_para_gnn.1} parent=17 // pred_fallthru
        _
      // Predicated region
      $region41: #{headline_para_gnn.1} parent=17 // pred_check
        _
      $region42: #{headline_para_gnn.1} parent=17 // pred_check_branch
        %45 = sbr.rel target = $region44
      $region43: #{headline_para_gnn.1} parent=17 // pred_region
        _
      $region44: #{headline_para_gnn.1} parent=17 // pred_fallthru
        _
    $region18: #{headline_para_gnn.1} parent=14 // pred_fallthru
      _
    // Predicated region
    $region19: #{headline_para_gnn.1} parent=14 // pred_check
      _
    $region20: #{headline_para_gnn.1} parent=14 // pred_check_branch
      %19 = sbr.rel target = $region22
    $region21: #{headline_para_gnn.1} parent=14 // pred_region
      %s21 = ssub.s32 256, 1
      loop: start=0, step=1, limit=1
      $region23: #{headline_para_gnn.1} parent=21 // loop_pre_header
        _
      $region24: #{headline_para_gnn.1} parent=21 // loop_header
        %s23 = sphi 0, %s27
        %p24 = scmp.ge.s32.totalorder %s23, 1
        %s28 = sphi %s0, %s0
        %s29 = sphi [#allocation2], [#allocation2]
      $region25: #{headline_para_gnn.1} parent=21 // loop_header_branch
        %26 = sbr.rel (%p24) target = $region29
      $region26: #{headline_para_gnn.1} parent=21 // loop_body
        %v30 = vld [vmem:[%s28] sm:%s21]
        %31 = vst [vmem:[%s29] sm:%s21] %v30
      $region27: #{headline_para_gnn.1} parent=21 // loop_footer
        %s27 = sadd.s32 1, %s23
      $region28: #{headline_para_gnn.1} parent=21 // loop_footer_branch
        %22 = sbr.rel target = $region24
      $region29: #{headline_para_gnn.1} parent=21 // loop_exit
        _
    $region22: #{headline_para_gnn.1} parent=14 // pred_fallthru
      _
    // Predicated region
    $region45: #{headline_para_gnn.1} parent=14 // pred_check
      _
    $region46: #{headline_para_gnn.1} parent=14 // pred_check_branch
      %48 = sbr.rel (0) target = $region48
    $region47: #{headline_para_gnn.1} parent=14 // pred_region
      %49 = vsyncadd [#allocation3], 128
    $region48: #{headline_para_gnn.1} parent=14 // pred_fallthru
      _
    %s50 = smul.u32 4, 2
    %s51 = smul.u32 %s50, 1
    %s52 = sshll.u32 %s51, 4
    %53 = dma.done [#allocation3], %s52
  %v54 = vld [vmem:[%s1] sm:$0xff]
  %v55 = vld [vmem:[%s1 + $0x8] sm:$0xff]
  %v56 = vld [vmem:[%s1 + $0x10] sm:$0xff]
  %v57 = vld [vmem:[%s1 + $0x18] sm:$0xff]
  %v58 = vld [vmem:[%s2] sm:$0xf]
  %v59 = vld [vmem:[%s2 + $0x4] sm:$0xf]
  %v60 = vld [vmem:[%s2 + $0x8] sm:$0xf]
  %v61 = vld [vmem:[%s2 + $0xc] sm:$0xf]
  %v62 = vpack.c.bf16 %v55, %v54
  %v63 = vpack.c.bf16 %v57, %v56
  %v68 = vunpack.c.l.b16 %v58
  %v69 = vunpack.c.l.b16 %v59
  %v70 = vunpack.c.l.b16 %v60
  %v71 = vunpack.c.l.b16 %v61
  %v72 = vpack.c.b16 %v69, %v68
  %v73 = vpack.c.b16 %v71, %v70
  %vm74 = vcmask 261120
  %v76 = vsel %vm74, %v72, 0
  %v79 = vsel %vm74, %v73, 0
  %81 = vmatpush.bf16.msra.mxu0 0
  %82 = vmatpush.bf16.msra.mxu0 0
  %83 = vmatpush.bf16.msra.mxu0 0
  %84 = vmatpush.bf16.msra.mxu0 0
  %85 = vmatpush.bf16.msra.mxu0 0
  %86 = vmatpush.bf16.msra.mxu0 0
  %87 = vmatpush.bf16.msra.mxu0 %v63
  %88 = vmatpush.bf16.msra.mxu0 %v62
  %89 = vmatmul.bf16.gmra.mxu0 %v76
  %v90 = vpop.f32.mrf.mxu0
  %v91 = vadd.f32 0.0, %v90
  %v92 = vpop.f32.mrf.mxu0
  %v93 = vadd.f32 0.0, %v92
  %94 = vmatmul.bf16.gmra.mxu0 %v79
  %v95 = vpop.f32.mrf.mxu0
  %v96 = vadd.f32 0.0, %v95
  %v97 = vpop.f32.mrf.mxu0
  %v98 = vadd.f32 0.0, %v97
  %99 = vdwg.mxu0
  %v100 = vpack.c.bf16 %v93, %v91
  %v101 = vpack.c.bf16 %v98, %v96
  %v102 = vld [vmem:[#allocation2] sm:$0xf]
  %v103 = vld [vmem:[#allocation2 + $0x4] sm:$0xf]
  %v104 = vld [vmem:[%s3] sm:$0xff]
  %v105 = vld [vmem:[%s3 + $0x8] sm:$0xff]
  %v106 = vld [vmem:[%s3 + $0x10] sm:$0xff]
  %v107 = vld [vmem:[%s3 + $0x18] sm:$0xff]
  %109 = vset.pattern.permute.xlu0 0
  %110 = vperm.xlu0 %109, %v104
  %v111 = vpop.permute.xlu0 %110
  %114 = vset.pattern.permute.xlu0 0
  %115 = vperm.xlu0 %114, %v105
  %v116 = vpop.permute.xlu0 %115
  %119 = vset.pattern.permute.xlu0 0
  %120 = vperm.xlu0 %119, %v106
  %v121 = vpop.permute.xlu0 %120
  %124 = vset.pattern.permute.xlu0 0
  %125 = vperm.xlu0 %124, %v107
  %v126 = vpop.permute.xlu0 %125
  %v130 = vunpack.c.l.b16 %v102
  %v131 = vunpack.c.l.b16 %v103
  %v132 = vpack.c.b16 %v131, %v130
  %vm134 = vcmask 130048
  %v136 = vsel %vm134, %v100, 0
  %v139 = vsel %vm134, %v101, 0
  %141 = vmatpush.bf16.msra.mxu0 0
  %142 = vmatpush.bf16.msra.mxu0 0
  %143 = vmatpush.bf16.msra.mxu0 0
  %144 = vmatpush.bf16.msra.mxu0 0
  %145 = vmatpush.bf16.msra.mxu0 0
  %146 = vmatpush.bf16.msra.mxu0 0
  %147 = vmatpush.bf16.msra.mxu0 0
  %148 = vmatpush.bf16.msra.mxu0 %v132
  %149 = vmatmul.bf16.gmra.mxu0 %v136
  %v150 = vpop.f32.mrf.mxu0
  %v151 = vadd.f32 %v111, %v150
  %v152 = vpop.f32.mrf.mxu0
  %v153 = vadd.f32 %v116, %v152
  %154 = vmatmul.bf16.gmra.mxu0 %v139
  %v155 = vpop.f32.mrf.mxu0
  %v156 = vadd.f32 %v121, %v155
  %v157 = vpop.f32.mrf.mxu0
  %v158 = vadd.f32 %v126, %v157
  %159 = vdwg.mxu0
  %v160 = vadd.f32 %v151, %v54
  %v161 = vadd.f32 %v153, %v55
  %v162 = vadd.f32 %v156, %v56
  %v163 = vadd.f32 %v158, %v57
  %v164 = vmax.f32 %v160, 0.0
  %v165 = vmax.f32 %v161, 0.0
  %v166 = vmax.f32 %v162, 0.0
  %v167 = vmax.f32 %v163, 0.0
  %168 = vst.msk [vmem:[%s4] sm:$0xff] %vm134, %v164
  %169 = vst.msk [vmem:[%s4 + $0x8] sm:$0xff] %vm134, %v165
  %170 = vst.msk [vmem:[%s4 + $0x10] sm:$0xff] %vm134, %v166
  %171 = vst.msk [vmem:[%s4 + $0x18] sm:$0xff] %vm134, %v167
  %s172 = scalar_lea.vmem %s2, 16
  %v173 = vld [vmem:[%s172] sm:$0xf]
  %v174 = vld [vmem:[%s172 + $0x4] sm:$0xf]
  %v175 = vld [vmem:[%s172 + $0x8] sm:$0xf]
  %v176 = vld [vmem:[%s172 + $0xc] sm:$0xf]
  %v177 = vpack.c.bf16 %v165, %v164
  %v178 = vpack.c.bf16 %v167, %v166
  %v183 = vunpack.c.l.b16 %v173
  %v184 = vunpack.c.l.b16 %v174
  %v185 = vunpack.c.l.b16 %v175
  %v186 = vunpack.c.l.b16 %v176
  %v187 = vpack.c.b16 %v184, %v183
  %v188 = vpack.c.b16 %v186, %v185
  %v190 = vsel %vm74, %v187, 0
  %v193 = vsel %vm74, %v188, 0
  %195 = vmatpush.bf16.msra.mxu0 0
  %196 = vmatpush.bf16.msra.mxu0 0
  %197 = vmatpush.bf16.msra.mxu0 0
  %198 = vmatpush.bf16.msra.mxu0 0
  %199 = vmatpush.bf16.msra.mxu0 0
  %200 = vmatpush.bf16.msra.mxu0 0
  %201 = vmatpush.bf16.msra.mxu0 %v178
  %202 = vmatpush.bf16.msra.mxu0 %v177
  %203 = vmatmul.bf16.gmra.mxu0 %v190
  %v204 = vpop.f32.mrf.mxu0
  %v205 = vadd.f32 0.0, %v204
  %v206 = vpop.f32.mrf.mxu0
  %v207 = vadd.f32 0.0, %v206
  %208 = vmatmul.bf16.gmra.mxu0 %v193
  %v209 = vpop.f32.mrf.mxu0
  %v210 = vadd.f32 0.0, %v209
  %v211 = vpop.f32.mrf.mxu0
  %v212 = vadd.f32 0.0, %v211
  %213 = vdwg.mxu0
  %v214 = vpack.c.bf16 %v207, %v205
  %v215 = vpack.c.bf16 %v212, %v210
  %v216 = vld [vmem:[#allocation2] sm:$0xf]
  %v217 = vld [vmem:[#allocation2 + $0x4] sm:$0xf]
  %s218 = scalar_lea.vmem %s3, 32
  %v219 = vld [vmem:[%s218] sm:$0xff]
  %v220 = vld [vmem:[%s218 + $0x8] sm:$0xff]
  %v221 = vld [vmem:[%s218 + $0x10] sm:$0xff]
  %v222 = vld [vmem:[%s218 + $0x18] sm:$0xff]
  %224 = vset.pattern.permute.xlu0 0
  %225 = vperm.xlu0 %224, %v219
  %v226 = vpop.permute.xlu0 %225
  %229 = vset.pattern.permute.xlu0 0
  %230 = vperm.xlu0 %229, %v220
  %v231 = vpop.permute.xlu0 %230
  %234 = vset.pattern.permute.xlu0 0
  %235 = vperm.xlu0 %234, %v221
  %v236 = vpop.permute.xlu0 %235
  %239 = vset.pattern.permute.xlu0 0
  %240 = vperm.xlu0 %239, %v222
  %v241 = vpop.permute.xlu0 %240
  %v245 = vunpack.c.l.b16 %v216
  %v246 = vunpack.c.l.b16 %v217
  %v247 = vpack.c.b16 %v246, %v245
  %v250 = vsel %vm134, %v214, 0
  %v253 = vsel %vm134, %v215, 0
  %255 = vmatpush.bf16.msra.mxu0 0
  %256 = vmatpush.bf16.msra.mxu0 0
  %257 = vmatpush.bf16.msra.mxu0 0
  %258 = vmatpush.bf16.msra.mxu0 0
  %259 = vmatpush.bf16.msra.mxu0 0
  %260 = vmatpush.bf16.msra.mxu0 0
  %261 = vmatpush.bf16.msra.mxu0 0
  %262 = vmatpush.bf16.msra.mxu0 %v247
  %263 = vmatmul.bf16.gmra.mxu0 %v250
  %v264 = vpop.f32.mrf.mxu0
  %v265 = vadd.f32 %v226, %v264
  %v266 = vpop.f32.mrf.mxu0
  %v267 = vadd.f32 %v231, %v266
  %268 = vmatmul.bf16.gmra.mxu0 %v253
  %v269 = vpop.f32.mrf.mxu0
  %v270 = vadd.f32 %v236, %v269
  %v271 = vpop.f32.mrf.mxu0
  %v272 = vadd.f32 %v241, %v271
  %273 = vdwg.mxu0
  %v274 = vadd.f32 %v265, %v164
  %v275 = vadd.f32 %v267, %v165
  %v276 = vadd.f32 %v270, %v166
  %v277 = vadd.f32 %v272, %v167
  %v278 = vmax.f32 %v274, 0.0
  %v279 = vmax.f32 %v275, 0.0
  %v280 = vmax.f32 %v276, 0.0
  %v281 = vmax.f32 %v277, 0.0
  %s282 = scalar_lea.vmem %s4, 32
  %283 = vst.msk [vmem:[%s282] sm:$0xff] %vm134, %v278
  %284 = vst.msk [vmem:[%s282 + $0x8] sm:$0xff] %vm134, %v279
  %285 = vst.msk [vmem:[%s282 + $0x10] sm:$0xff] %vm134, %v280
  %286 = vst.msk [vmem:[%s282 + $0x18] sm:$0xff] %vm134, %v281
  %s287 = scalar_lea.vmem %s2, 32
  %v288 = vld [vmem:[%s287] sm:$0xf]
  %v289 = vld [vmem:[%s287 + $0x4] sm:$0xf]
  %v290 = vld [vmem:[%s287 + $0x8] sm:$0xf]
  %v291 = vld [vmem:[%s287 + $0xc] sm:$0xf]
  %v292 = vpack.c.bf16 %v279, %v278
  %v293 = vpack.c.bf16 %v281, %v280
  %v298 = vunpack.c.l.b16 %v288
  %v299 = vunpack.c.l.b16 %v289
  %v300 = vunpack.c.l.b16 %v290
  %v301 = vunpack.c.l.b16 %v291
  %v302 = vpack.c.b16 %v299, %v298
  %v303 = vpack.c.b16 %v301, %v300
  %v305 = vsel %vm74, %v302, 0
  %v308 = vsel %vm74, %v303, 0
  %310 = vmatpush.bf16.msra.mxu0 0
  %311 = vmatpush.bf16.msra.mxu0 0
  %312 = vmatpush.bf16.msra.mxu0 0
  %313 = vmatpush.bf16.msra.mxu0 0
  %314 = vmatpush.bf16.msra.mxu0 0
  %315 = vmatpush.bf16.msra.mxu0 0
  %316 = vmatpush.bf16.msra.mxu0 %v293
  %317 = vmatpush.bf16.msra.mxu0 %v292
  %318 = vmatmul.bf16.gmra.mxu0 %v305
  %v319 = vpop.f32.mrf.mxu0
  %v320 = vadd.f32 0.0, %v319
  %v321 = vpop.f32.mrf.mxu0
  %v322 = vadd.f32 0.0, %v321
  %323 = vmatmul.bf16.gmra.mxu0 %v308
  %v324 = vpop.f32.mrf.mxu0
  %v325 = vadd.f32 0.0, %v324
  %v326 = vpop.f32.mrf.mxu0
  %v327 = vadd.f32 0.0, %v326
  %328 = vdwg.mxu0
  %v329 = vpack.c.bf16 %v322, %v320
  %v330 = vpack.c.bf16 %v327, %v325
  %v331 = vld [vmem:[#allocation2] sm:$0xf]
  %v332 = vld [vmem:[#allocation2 + $0x4] sm:$0xf]
  %s333 = scalar_lea.vmem %s3, 64
  %v334 = vld [vmem:[%s333] sm:$0xff]
  %v335 = vld [vmem:[%s333 + $0x8] sm:$0xff]
  %v336 = vld [vmem:[%s333 + $0x10] sm:$0xff]
  %v337 = vld [vmem:[%s333 + $0x18] sm:$0xff]
  %339 = vset.pattern.permute.xlu0 0
  %340 = vperm.xlu0 %339, %v334
  %v341 = vpop.permute.xlu0 %340
  %344 = vset.pattern.permute.xlu0 0
  %345 = vperm.xlu0 %344, %v335
  %v346 = vpop.permute.xlu0 %345
  %349 = vset.pattern.permute.xlu0 0
  %350 = vperm.xlu0 %349, %v336
  %v351 = vpop.permute.xlu0 %350
  %354 = vset.pattern.permute.xlu0 0
  %355 = vperm.xlu0 %354, %v337
  %v356 = vpop.permute.xlu0 %355
  %v360 = vunpack.c.l.b16 %v331
  %v361 = vunpack.c.l.b16 %v332
  %v362 = vpack.c.b16 %v361, %v360
  %v365 = vsel %vm134, %v329, 0
  %v368 = vsel %vm134, %v330, 0
  %370 = vmatpush.bf16.msra.mxu0 0
  %371 = vmatpush.bf16.msra.mxu0 0
  %372 = vmatpush.bf16.msra.mxu0 0
  %373 = vmatpush.bf16.msra.mxu0 0
  %374 = vmatpush.bf16.msra.mxu0 0
  %375 = vmatpush.bf16.msra.mxu0 0
  %376 = vmatpush.bf16.msra.mxu0 0
  %377 = vmatpush.bf16.msra.mxu0 %v362
  %378 = vmatmul.bf16.gmra.mxu0 %v365
  %v379 = vpop.f32.mrf.mxu0
  %v380 = vadd.f32 %v341, %v379
  %v381 = vpop.f32.mrf.mxu0
  %v382 = vadd.f32 %v346, %v381
  %383 = vmatmul.bf16.gmra.mxu0 %v368
  %v384 = vpop.f32.mrf.mxu0
  %v385 = vadd.f32 %v351, %v384
  %v386 = vpop.f32.mrf.mxu0
  %v387 = vadd.f32 %v356, %v386
  %388 = vdwg.mxu0
  %v389 = vadd.f32 %v380, %v278
  %v390 = vadd.f32 %v382, %v279
  %v391 = vadd.f32 %v385, %v280
  %v392 = vadd.f32 %v387, %v281
  %v393 = vmax.f32 %v389, 0.0
  %v394 = vmax.f32 %v390, 0.0
  %v395 = vmax.f32 %v391, 0.0
  %v396 = vmax.f32 %v392, 0.0
  %s397 = scalar_lea.vmem %s4, 64
  %398 = vst.msk [vmem:[%s397] sm:$0xff] %vm134, %v393
  %399 = vst.msk [vmem:[%s397 + $0x8] sm:$0xff] %vm134, %v394
  %400 = vst.msk [vmem:[%s397 + $0x10] sm:$0xff] %vm134, %v395
  %401 = vst.msk [vmem:[%s397 + $0x18] sm:$0xff] %vm134, %v396
  %s402 = scalar_lea.vmem %s2, 48
  %v403 = vld [vmem:[%s402] sm:$0xf]
  %v404 = vld [vmem:[%s402 + $0x4] sm:$0xf]
  %v405 = vld [vmem:[%s402 + $0x8] sm:$0xf]
  %v406 = vld [vmem:[%s402 + $0xc] sm:$0xf]
  %v407 = vpack.c.bf16 %v394, %v393
  %v408 = vpack.c.bf16 %v396, %v395
  %v413 = vunpack.c.l.b16 %v403
  %v414 = vunpack.c.l.b16 %v404
  %v415 = vunpack.c.l.b16 %v405
  %v416 = vunpack.c.l.b16 %v406
  %v417 = vpack.c.b16 %v414, %v413
  %v418 = vpack.c.b16 %v416, %v415
  %v420 = vsel %vm74, %v417, 0
  %v423 = vsel %vm74, %v418, 0
  %425 = vmatpush.bf16.msra.mxu0 0
  %426 = vmatpush.bf16.msra.mxu0 0
  %427 = vmatpush.bf16.msra.mxu0 0
  %428 = vmatpush.bf16.msra.mxu0 0
  %429 = vmatpush.bf16.msra.mxu0 0
  %430 = vmatpush.bf16.msra.mxu0 0
  %431 = vmatpush.bf16.msra.mxu0 %v408
  %432 = vmatpush.bf16.msra.mxu0 %v407
  %433 = vmatmul.bf16.gmra.mxu0 %v420
  %v434 = vpop.f32.mrf.mxu0
  %v435 = vadd.f32 0.0, %v434
  %v436 = vpop.f32.mrf.mxu0
  %v437 = vadd.f32 0.0, %v436
  %438 = vmatmul.bf16.gmra.mxu0 %v423
  %v439 = vpop.f32.mrf.mxu0
  %v440 = vadd.f32 0.0, %v439
  %v441 = vpop.f32.mrf.mxu0
  %v442 = vadd.f32 0.0, %v441
  %443 = vdwg.mxu0
  %v444 = vpack.c.bf16 %v437, %v435
  %v445 = vpack.c.bf16 %v442, %v440
  %v446 = vld [vmem:[#allocation2] sm:$0xf]
  %v447 = vld [vmem:[#allocation2 + $0x4] sm:$0xf]
  %s448 = scalar_lea.vmem %s3, 96
  %v449 = vld [vmem:[%s448] sm:$0xff]
  %v450 = vld [vmem:[%s448 + $0x8] sm:$0xff]
  %v451 = vld [vmem:[%s448 + $0x10] sm:$0xff]
  %v452 = vld [vmem:[%s448 + $0x18] sm:$0xff]
  %454 = vset.pattern.permute.xlu0 0
  %455 = vperm.xlu0 %454, %v449
  %v456 = vpop.permute.xlu0 %455
  %459 = vset.pattern.permute.xlu0 0
  %460 = vperm.xlu0 %459, %v450
  %v461 = vpop.permute.xlu0 %460
  %464 = vset.pattern.permute.xlu0 0
  %465 = vperm.xlu0 %464, %v451
  %v466 = vpop.permute.xlu0 %465
  %469 = vset.pattern.permute.xlu0 0
  %470 = vperm.xlu0 %469, %v452
  %v471 = vpop.permute.xlu0 %470
  %v475 = vunpack.c.l.b16 %v446
  %v476 = vunpack.c.l.b16 %v447
  %v477 = vpack.c.b16 %v476, %v475
  %v480 = vsel %vm134, %v444, 0
  %v483 = vsel %vm134, %v445, 0
  %485 = vmatpush.bf16.msra.mxu0 0
  %486 = vmatpush.bf16.msra.mxu0 0
  %487 = vmatpush.bf16.msra.mxu0 0
  %488 = vmatpush.bf16.msra.mxu0 0
  %489 = vmatpush.bf16.msra.mxu0 0
  %490 = vmatpush.bf16.msra.mxu0 0
  %491 = vmatpush.bf16.msra.mxu0 0
  %492 = vmatpush.bf16.msra.mxu0 %v477
  %493 = vmatmul.bf16.gmra.mxu0 %v480
  %v494 = vpop.f32.mrf.mxu0
  %v495 = vadd.f32 %v456, %v494
  %v496 = vpop.f32.mrf.mxu0
  %v497 = vadd.f32 %v461, %v496
  %498 = vmatmul.bf16.gmra.mxu0 %v483
  %v499 = vpop.f32.mrf.mxu0
  %v500 = vadd.f32 %v466, %v499
  %v501 = vpop.f32.mrf.mxu0
  %v502 = vadd.f32 %v471, %v501
  %503 = vdwg.mxu0
  %v504 = vadd.f32 %v495, %v393
  %v505 = vadd.f32 %v497, %v394
  %v506 = vadd.f32 %v500, %v395
  %v507 = vadd.f32 %v502, %v396
  %v508 = vmax.f32 %v504, 0.0
  %v509 = vmax.f32 %v505, 0.0
  %v510 = vmax.f32 %v506, 0.0
  %v511 = vmax.f32 %v507, 0.0
  %s512 = scalar_lea.vmem %s4, 96
  %513 = vst.msk [vmem:[%s512] sm:$0xff] %vm134, %v508
  %514 = vst.msk [vmem:[%s512 + $0x8] sm:$0xff] %vm134, %v509
  %515 = vst.msk [vmem:[%s512 + $0x10] sm:$0xff] %vm134, %v510
  %516 = vst.msk [vmem:[%s512 + $0x18] sm:$0xff] %vm134, %v511
  // Predicated region
  $region49: #{headline_para_gnn.1} parent=0 // pred_check
    _
  $region50: #{headline_para_gnn.1} parent=0 // pred_check_branch
    %518 = sbr.rel (0) target = $region52
  $region51: #{headline_para_gnn.1} parent=0 // pred_region
    _
  $region52: #{headline_para_gnn.1} parent=0 // pred_fallthru
    _
  // Predicated region
  $region53: #{headline_para_gnn.1} parent=0 // pred_check
    _
  $region54: #{headline_para_gnn.1} parent=0 // pred_check_branch
    %520 = sbr.rel (0) target = $region56
  $region55: #{headline_para_gnn.1} parent=0 // pred_region
    _
  $region56: #{headline_para_gnn.1} parent=0 // pred_fallthru
    _

</llo_original>
